<compile_context>
chip_gen: v7x
topology: tpu7x:2x2x1
jax: 0.10.0
libtpu: 0.0.40
codegen_flags: <defaults>
</compile_context>

<pallas_src>
import functools

import numpy as np
import jax
import jax.numpy as jnp
from jax.experimental import pallas as pl
from jax.experimental.pallas import tpu as pltpu

_NEG10_OVER_LN10 = -10.0 / float(np.log(10.0))


def _snr_loss_kernel(x_ref, ridx_ref, basis_ref, loss_ref, *, min_idx, max_idx, f_pad):
    # x_ref:     (TB, N)        bf16 time-domain rows
    # ridx_ref:  (TB, 1)        int32 per-row pulse-bin index (precomputed)
    # basis_ref: (N, 2*f_pad)   bf16 fused [cos | -sin] / sqrt(N) DFT basis
    # loss_ref:  (TB, 1)        f32 per-row SNR loss
    x = x_ref[...]
    w = jnp.dot(x, basis_ref[...], preferred_element_type=jnp.float32)  # (TB, 2*f_pad)
    xr = w[:, :f_pad]
    xi = w[:, f_pad:]
    p1 = xr * xr + xi * xi                                              # (TB, f_pad) power

    tb = p1.shape[0]
    idx = jax.lax.broadcasted_iota(jnp.int32, (tb, f_pad), 1)
    ref_idx = ridx_ref[...]                                             # (TB, 1)

    # pulse-frequency power P1[b, ref_idx[b]]
    pulse_amp = jnp.sum(jnp.where(idx == ref_idx, p1, 0.0),
                        axis=-1, keepdims=True)                         # (TB, 1)

    # sums over P1[b, min_idx:ref_idx-1] and P1[b, ref_idx+2:max_idx]
    # (padded bins idx >= f_bins carry zero basis columns -> zero power)
    band = ((idx >= min_idx) & (idx <= ref_idx - 2)) | \
           ((idx >= ref_idx + 2) & (idx <= max_idx - 1))
    other_sum = jnp.sum(jnp.where(band, p1, 0.0), axis=-1, keepdims=True)
    other_avg = other_sum * (1.0 / float(max_idx - min_idx - 3))

    # -10 * log10(pulse / other_avg)  ==  (-10/ln10) * (ln(pulse) - ln(other))
    loss_ref[...] = _NEG10_OVER_LN10 * (jnp.log(pulse_amp) - jnp.log(other_avg))


def snr_loss_pallas(outputs, targets, Fs=20):
    n = int(outputs.shape[-1])
    x = outputs.reshape(-1, n).astype(jnp.float32)
    tgt = targets.reshape(-1).astype(jnp.float32)
    b = x.shape[0]

    f_bins = n // 2 + 1
    f_pad = ((f_bins + 127) // 128) * 128        # lane-align the spectrum width

    # static band edges on the fixed frequency grid (pure setup)
    f_np = np.linspace(0.0, Fs / 2.0, f_bins, dtype=np.float32)
    min_idx = int(np.argmin(np.abs(f_np - 40.0 / 60.0)))
    max_idx = int(np.argmin(np.abs(f_np - 250.0 / 60.0)))

    # per-row pulse-bin index computed OUTSIDE the kernel (matches torch.argmin)
    ref_idx = jnp.argmin(jnp.abs(jnp.asarray(f_np)[None, :] - tgt[:, None]),
                         axis=-1).astype(jnp.int32)                      # (B,)

    # fused, zero-padded, bf16 normalized one-sided DFT basis: [cos | -sin]/sqrt(N)
    nn_ = np.arange(n, dtype=np.float64)[:, None]
    kk = np.arange(f_pad, dtype=np.float64)[None, :]
    ang = 2.0 * np.pi * nn_ * kk / n
    c = np.cos(ang) / np.sqrt(n)
    s = -np.sin(ang) / np.sqrt(n)
    c[:, f_bins:] = 0.0
    s[:, f_bins:] = 0.0
    basis = jnp.asarray(np.concatenate([c, s], axis=1), dtype=jnp.bfloat16)  # (N, 2*f_pad)

    # tile the row dimension; pad B up to a multiple of the tile
    tile_b = 128 if b >= 128 else int(-(-b // 8) * 8)
    b_pad = int(-(-b // tile_b) * tile_b)
    x_p = jnp.zeros((b_pad, n), jnp.float32).at[:b].set(x).astype(jnp.bfloat16)
    r_p = jnp.zeros((b_pad, 1), jnp.int32).at[:b, 0].set(ref_idx)

    kernel = functools.partial(_snr_loss_kernel, min_idx=min_idx,
                               max_idx=max_idx, f_pad=f_pad)
    losses = pl.pallas_call(
        kernel,
        out_shape=jax.ShapeDtypeStruct((b_pad, 1), jnp.float32),
        grid_spec=pltpu.PrefetchScalarGridSpec(
            num_scalar_prefetch=0,
            grid=(b_pad // tile_b,),
            in_specs=[
                pl.BlockSpec((tile_b, n), lambda i: (i, 0)),       # x rows stream
                pl.BlockSpec((tile_b, 1), lambda i: (i, 0)),       # per-row ref_idx
                pl.BlockSpec((n, 2 * f_pad), lambda i: (0, 0)),    # basis VMEM-resident
            ],
            out_specs=pl.BlockSpec((tile_b, 1), lambda i: (i, 0)),
        ),
        compiler_params=pltpu.CompilerParams(
            dimension_semantics=("parallel",),          # independent per-row-tile work
            vmem_limit_bytes=32 * 1024 * 1024,          # explicit (v5e default is 16 MiB)
        ),
    )(x_p, r_p, basis)

    return jnp.mean(losses[:b, 0])   # drop padded rows, final tiny mean in XLA


def snr_loss_ref(outputs, targets, Fs=20):
    """Plain-JAX reference matching the PyTorch module."""
    n = outputs.shape[-1]
    x = outputs.reshape(-1, n).astype(jnp.float32)
    t = np.asarray(targets).reshape(-1)
    f_bins = n // 2 + 1
    f = np.linspace(0.0, Fs / 2.0, f_bins, dtype=np.float32)
    min_idx = int(np.argmin(np.abs(f - 40.0 / 60.0)))
    max_idx = int(np.argmin(np.abs(f - 250.0 / 60.0)))
    X = jnp.fft.rfft(x, axis=-1) / jnp.sqrt(n)
    p1 = jnp.real(X) ** 2 + jnp.imag(X) ** 2
    losses = []
    for bi in range(x.shape[0]):
        ref_idx = int(np.argmin(np.abs(f - t[bi])))
        pa = p1[bi, ref_idx]
        osum = jnp.sum(p1[bi, min_idx:ref_idx - 1]) + jnp.sum(p1[bi, ref_idx + 2:max_idx])
        oavg = osum / (max_idx - min_idx - 3)
        losses.append(-10.0 * jnp.log10(pa / oavg))
    return jnp.mean(jnp.stack(losses))


if __name__ == "__main__":
    key = jax.random.PRNGKey(0)
    k1, k2, k3 = jax.random.split(key, 3)

    B0, B1, N = 2, 4, 128      # outputs: (2, 4, 128) -> 8 rows of length 128
    Fs = 20

    # reference pulse frequencies inside the pulse band (1..3 Hz)
    targets = jax.random.uniform(k1, (B0, B1), minval=1.0, maxval=3.0,
                                 dtype=jnp.float32)
    # signals: sinusoid at the target frequency + noise
    t_axis = jnp.arange(N, dtype=jnp.float32) / Fs
    sig = jnp.sin(2.0 * jnp.pi * targets[..., None] * t_axis)
    noise = 0.3 * jax.random.normal(k2, (B0, B1, N), dtype=jnp.float32)
    offset = 0.1 * jax.random.normal(k3, (B0, B1, 1), dtype=jnp.float32)
    outputs = sig + noise + offset

    loss = jax.block_until_ready(snr_loss_pallas(outputs, targets, Fs=Fs))
    ref = jax.block_until_ready(snr_loss_ref(outputs, targets, Fs=Fs))

    np.testing.assert_allclose(np.asarray(loss), np.asarray(ref),
                               rtol=5e-2, atol=1e-1)
    print("KERNEL_OK")
</pallas_src>

<mosaic_0001>
module attributes {stable_mosaic.version = 11 : i64} {
  func.func @_snr_loss_kernel(%arg0: i32, %arg1: memref<8x128xbf16, #tpu.memory_space<vmem>>, %arg2: memref<8x1xi32, #tpu.memory_space<vmem>>, %arg3: memref<128x256xbf16, #tpu.memory_space<vmem>>, %arg4: memref<8x1xf32, #tpu.memory_space<vmem>>) attributes {dimension_semantics = [#tpu.dimension_semantics<parallel>], iteration_bounds = array<i64: 1>, scalar_prefetch = 0 : i64, scratch_operands = 0 : i64, tpu.core_type = #tpu.core_type<tc>, window_params = [{transform_indices = @transform_0, window_bounds = array<i64: 8, 128>}, {transform_indices = @transform_1, window_bounds = array<i64: 8, 1>}, {pipeline_mode = #tpu.pipeline_mode<synchronous>, transform_indices = @transform_2, window_bounds = array<i64: 128, 256>}, {transform_indices = @transform_3, window_bounds = array<i64: 8, 1>}]} {
    %c0 = arith.constant 0 : index
    %c0_0 = arith.constant 0 : index
    %0 = vector.load %arg1[%c0, %c0_0] : memref<8x128xbf16, #tpu.memory_space<vmem>>, vector<8x128xbf16>
    %c0_1 = arith.constant 0 : index
    %c0_2 = arith.constant 0 : index
    %1 = vector.load %arg3[%c0_1, %c0_2] : memref<128x256xbf16, #tpu.memory_space<vmem>>, vector<128x256xbf16>
    %cst = arith.constant dense<0.000000e+00> : vector<8x256xf32>
    %2 = tpu.matmul %0, %1, %cst {dimension_numbers = #tpu.dot_dimension_numbers<[1], [0], [0], [1], [0, 0, 1, 1], [], []>} : vector<8x128xbf16>, vector<128x256xbf16>, vector<8x256xf32> -> vector<8x256xf32>
    %3 = vector.extract_strided_slice %2 {offsets = [0, 0], sizes = [8, 128], strides = [1, 1]} : vector<8x256xf32> to vector<8x128xf32>
    %4 = vector.extract_strided_slice %2 {offsets = [0, 128], sizes = [8, 128], strides = [1, 1]} : vector<8x256xf32> to vector<8x128xf32>
    %5 = arith.mulf %3, %3 : vector<8x128xf32>
    %6 = arith.mulf %4, %4 : vector<8x128xf32>
    %7 = arith.addf %5, %6 : vector<8x128xf32>
    %8 = tpu.iota {dimensions = array<i32: 1>} : vector<8x128xi32>
    %c0_3 = arith.constant 0 : index
    %c0_4 = arith.constant 0 : index
    %9 = vector.load %arg2[%c0_3, %c0_4] : memref<8x1xi32, #tpu.memory_space<vmem>>, vector<8x1xi32>
    %10 = vector.broadcast %9 : vector<8x1xi32> to vector<8x128xi32>
    %11 = arith.cmpi eq, %8, %10 : vector<8x128xi32>
    %cst_5 = arith.constant 0.000000e+00 : f32
    %12 = vector.broadcast %cst_5 : f32 to vector<8x128xf32>
    %13 = arith.select %11, %7, %12 : vector<8x128xi1>, vector<8x128xf32>
    %cst_6 = arith.constant dense<0.000000e+00> : vector<8xf32>
    %14 = vector.multi_reduction <add>, %13, %cst_6 [1] : vector<8x128xf32> to vector<8xf32>
    %15 = vector.shape_cast %14 : vector<8xf32> to vector<8x1xf32>
    %c4_i32 = arith.constant 4 : i32
    %16 = vector.broadcast %c4_i32 : i32 to vector<8x128xi32>
    %17 = arith.cmpi sge, %8, %16 : vector<8x128xi32>
    %c2_i32 = arith.constant 2 : i32
    %18 = vector.broadcast %c2_i32 : i32 to vector<8x1xi32>
    %19 = arith.subi %9, %18 : vector<8x1xi32>
    %20 = vector.broadcast %19 : vector<8x1xi32> to vector<8x128xi32>
    %21 = arith.cmpi sle, %8, %20 : vector<8x128xi32>
    %22 = arith.andi %17, %21 : vector<8x128xi1>
    %c2_i32_7 = arith.constant 2 : i32
    %23 = vector.broadcast %c2_i32_7 : i32 to vector<8x1xi32>
    %24 = arith.addi %9, %23 : vector<8x1xi32>
    %25 = vector.broadcast %24 : vector<8x1xi32> to vector<8x128xi32>
    %26 = arith.cmpi sge, %8, %25 : vector<8x128xi32>
    %c26_i32 = arith.constant 26 : i32
    %27 = vector.broadcast %c26_i32 : i32 to vector<8x128xi32>
    %28 = arith.cmpi sle, %8, %27 : vector<8x128xi32>
    %29 = arith.andi %26, %28 : vector<8x128xi1>
    %30 = arith.ori %22, %29 : vector<8x128xi1>
    %cst_8 = arith.constant 0.000000e+00 : f32
    %31 = vector.broadcast %cst_8 : f32 to vector<8x128xf32>
    %32 = arith.select %30, %7, %31 : vector<8x128xi1>, vector<8x128xf32>
    %cst_9 = arith.constant dense<0.000000e+00> : vector<8xf32>
    %33 = vector.multi_reduction <add>, %32, %cst_9 [1] : vector<8x128xf32> to vector<8xf32>
    %34 = vector.shape_cast %33 : vector<8xf32> to vector<8x1xf32>
    %cst_10 = arith.constant 5.000000e-02 : f32
    %35 = vector.broadcast %cst_10 : f32 to vector<8x1xf32>
    %36 = arith.mulf %34, %35 : vector<8x1xf32>
    %37 = math.log %15 : vector<8x1xf32>
    %38 = math.log %36 : vector<8x1xf32>
    %39 = arith.subf %37, %38 : vector<8x1xf32>
    %cst_11 = arith.constant -4.34294462 : f32
    %40 = vector.broadcast %cst_11 : f32 to vector<8x1xf32>
    %41 = arith.mulf %40, %39 : vector<8x1xf32>
    %c0_12 = arith.constant 0 : index
    %c0_13 = arith.constant 0 : index
    %42 = vector.load %arg4[%c0_12, %c0_13] : memref<8x1xf32, #tpu.memory_space<vmem>>, vector<8x1xf32>
    tpu.vector_store %arg4[%c0_12, %c0_13], %41 {strides = array<i32>} : memref<8x1xf32, #tpu.memory_space<vmem>>, vector<8x1xf32>,
    return
  }
  func.func @transform_0(%arg0: i32) -> (i32, i32) {
    %c0_i32 = arith.constant 0 : i32
    %c0_i32_0 = arith.constant 0 : i32
    return %arg0, %c0_i32 : i32, i32
  }
  func.func @transform_1(%arg0: i32) -> (i32, i32) {
    %c0_i32 = arith.constant 0 : i32
    %c0_i32_0 = arith.constant 0 : i32
    return %arg0, %c0_i32 : i32, i32
  }
  func.func @transform_2(%arg0: i32) -> (i32, i32) {
    %c0_i32 = arith.constant 0 : i32
    %c0_i32_0 = arith.constant 0 : i32
    %c0_i32_1 = arith.constant 0 : i32
    return %c0_i32, %c0_i32_0 : i32, i32
  }
  func.func @transform_3(%arg0: i32) -> (i32, i32) {
    %c0_i32 = arith.constant 0 : i32
    %c0_i32_0 = arith.constant 0 : i32
    return %arg0, %c0_i32 : i32, i32
  }
}

</mosaic_0001>

<llo_original>
// kernel: tpu_custom_call.1
$region0: #{tpu_custom_call.1}
  #allocation0 [shape = 'u32[]', space=smem, size = 0x4, offset = 0x4, fixed_abs, tag = 'smem constant byte address 0x4 - core index']
  #allocation1 [shape = 'u32[144,128]{1,0:T(1,128)}', space=vmem, size = 0x12000, scoped, tag = 'internal scratch']
  %s0 = inlined_call_operand.vmem [shape: bf16[8,128], index: 0, kind: input, shape index: {}]
  %s1 = inlined_call_operand.vmem [shape: s32[8,1], index: 1, kind: input, shape index: {}]
  %s2 = inlined_call_operand.hbm [shape: bf16[128,256], index: 2, kind: input, shape index: {}]
  %s3 = inlined_call_operand.vmem [shape: f32[8,1], index: 3, kind: output, shape index: {}]
  %s4 = sld [smem:[#allocation0]]
  $region26: #{tpu_custom_call.1} parent=0
    _
  %s6 = ssub.s32 1, %s4
  %s7 = scalar_select 0, %s6, %s4
  $region1: #{tpu_custom_call.1} parent=0
    #allocation2 [shape = 'u8[65536]{0}', space=vmem, size = 0x10000, scoped, tag = 'input window, operand 2, single buffered']
    #allocation3 [shape = 's32[1]{0}', space=sflag, size = 0x4, scoped, tag = 'scoped memory for tpu_custom_call.1']
    %8 = vsyncpa [#allocation3], 0
    // Predicated region
    $region2: #{tpu_custom_call.1} parent=1 // pred_check
      _
    $region3: #{tpu_custom_call.1} parent=1 // pred_check_branch
      %10 = sbr.rel (0) target = $region5
    $region4: #{tpu_custom_call.1} parent=1 // pred_region
      _
    $region5: #{tpu_custom_call.1} parent=1 // pred_fallthru
      _
    // Predicated region
    $region6: #{tpu_custom_call.1} parent=1 // pred_check
      _
    $region7: #{tpu_custom_call.1} parent=1 // pred_check_branch
      %12 = sbr.rel (0) target = $region9
    $region8: #{tpu_custom_call.1} parent=1 // pred_region
      _
    $region9: #{tpu_custom_call.1} parent=1 // pred_fallthru
      _
    // Predicated region
    $region10: #{tpu_custom_call.1} parent=1 // pred_check
      _
    $region11: #{tpu_custom_call.1} parent=1 // pred_check_branch
      %14 = sbr.rel (0) target = $region13
    $region12: #{tpu_custom_call.1} parent=1 // pred_region
      %s16 = ssub.s32 2048, 2048
      %17 = vsyncadd [#allocation3], %s16
      %s18 = sshll.u32 [#allocation2], 4
      %s19 = int_to_ptr.vmem [resolvable:$true] %s18
      %24 = dma.hbm_to_vmem [thread:$0]  %s2, 2048, %s19, [#allocation3], 128, 128, 8
    $region13: #{tpu_custom_call.1} parent=1 // pred_fallthru
      _
    // Predicated region
    $region14: #{tpu_custom_call.1} parent=1 // pred_check
      _
    $region15: #{tpu_custom_call.1} parent=1 // pred_check_branch
      %26 = sbr.rel (0) target = $region17
    $region16: #{tpu_custom_call.1} parent=1 // pred_region
      %27 = dma.done [#allocation3], 2048
    $region17: #{tpu_custom_call.1} parent=1 // pred_fallthru
      _
    %v29 = vld [vmem:[%s0] sm:$0xf]
    %v30 = vld [vmem:[#allocation2] sm:$0xff]
    %v31 = vld [vmem:[#allocation2 + $0x8] sm:$0xff]
    %v32 = vld [vmem:[#allocation2 + $0x10] sm:$0xff]
    %v33 = vld [vmem:[#allocation2 + $0x18] sm:$0xff]
    %v34 = vld [vmem:[#allocation2 + $0x20] sm:$0xff]
    %v35 = vld [vmem:[#allocation2 + $0x28] sm:$0xff]
    %v36 = vld [vmem:[#allocation2 + $0x30] sm:$0xff]
    %v37 = vld [vmem:[#allocation2 + $0x38] sm:$0xff]
    %v38 = vld [vmem:[#allocation2 + $0x40] sm:$0xff]
    %v39 = vld [vmem:[#allocation2 + $0x48] sm:$0xff]
    %v40 = vld [vmem:[#allocation2 + $0x50] sm:$0xff]
    %v41 = vld [vmem:[#allocation2 + $0x58] sm:$0xff]
    %v42 = vld [vmem:[#allocation2 + $0x60] sm:$0xff]
    %v43 = vld [vmem:[#allocation2 + $0x68] sm:$0xff]
    %v44 = vld [vmem:[#allocation2 + $0x70] sm:$0xff]
    %v45 = vld [vmem:[#allocation2 + $0x78] sm:$0xff]
    %v62 = vunpack.c.l.b16 %v30
    %v63 = vunpack.c.h.b16 %v30
    %v64 = vunpack.c.l.b16 %v31
    %v65 = vunpack.c.h.b16 %v31
    %v66 = vunpack.c.l.b16 %v32
    %v67 = vunpack.c.h.b16 %v32
    %v68 = vunpack.c.l.b16 %v33
    %v69 = vunpack.c.h.b16 %v33
    %v70 = vunpack.c.l.b16 %v34
    %v71 = vunpack.c.h.b16 %v34
    %v72 = vunpack.c.l.b16 %v35
    %v73 = vunpack.c.h.b16 %v35
    %v74 = vunpack.c.l.b16 %v36
    %v75 = vunpack.c.h.b16 %v36
    %v76 = vunpack.c.l.b16 %v37
    %v77 = vunpack.c.h.b16 %v37
    %v78 = vunpack.c.l.b16 %v38
    %v79 = vunpack.c.h.b16 %v38
    %v80 = vunpack.c.l.b16 %v39
    %v81 = vunpack.c.h.b16 %v39
    %v82 = vunpack.c.l.b16 %v40
    %v83 = vunpack.c.h.b16 %v40
    %v84 = vunpack.c.l.b16 %v41
    %v85 = vunpack.c.h.b16 %v41
    %v86 = vunpack.c.l.b16 %v42
    %v87 = vunpack.c.h.b16 %v42
    %v88 = vunpack.c.l.b16 %v43
    %v89 = vunpack.c.h.b16 %v43
    %v90 = vunpack.c.l.b16 %v44
    %v91 = vunpack.c.h.b16 %v44
    %v92 = vunpack.c.l.b16 %v45
    %v93 = vunpack.c.h.b16 %v45
    %v94 = vpack.c.b16 %v64, %v62
    %v95 = vpack.c.b16 %v65, %v63
    %v96 = vpack.c.b16 %v68, %v66
    %v97 = vpack.c.b16 %v69, %v67
    %v98 = vpack.c.b16 %v72, %v70
    %v99 = vpack.c.b16 %v73, %v71
    %v100 = vpack.c.b16 %v76, %v74
    %v101 = vpack.c.b16 %v77, %v75
    %v102 = vpack.c.b16 %v80, %v78
    %v103 = vpack.c.b16 %v81, %v79
    %v104 = vpack.c.b16 %v84, %v82
    %v105 = vpack.c.b16 %v85, %v83
    %v106 = vpack.c.b16 %v88, %v86
    %v107 = vpack.c.b16 %v89, %v87
    %v108 = vpack.c.b16 %v92, %v90
    %v109 = vpack.c.b16 %v93, %v91
    %126 = vmatprep.subr.bf16.mxu0 %v95
    %127 = vmatpush1.bf16.msra.mxu0 %v94
    %128 = vmatprep.subr.bf16.mxu0 %v97
    %129 = vmatpush1.bf16.msra.mxu0 %v96
    %130 = vmatprep.subr.bf16.mxu0 %v99
    %131 = vmatpush1.bf16.msra.mxu0 %v98
    %132 = vmatprep.subr.bf16.mxu0 %v101
    %133 = vmatpush1.bf16.msra.mxu0 %v100
    %134 = vmatprep.subr.bf16.mxu0 %v103
    %135 = vmatpush1.bf16.msra.mxu0 %v102
    %136 = vmatprep.subr.bf16.mxu0 %v105
    %137 = vmatpush1.bf16.msra.mxu0 %v104
    %138 = vmatprep.subr.bf16.mxu0 %v107
    %139 = vmatpush1.bf16.msra.mxu0 %v106
    %140 = vmatprep.subr.bf16.mxu0 %v109
    %141 = vmatpush1.bf16.msra.mxu0 %v108
    %142 = vmatprep.subr.bf16.mxu0 0
    %143 = vmatpush1.bf16.msra.mxu0 0
    %144 = vmatprep.subr.bf16.mxu0 0
    %145 = vmatpush1.bf16.msra.mxu0 0
    %146 = vmatprep.subr.bf16.mxu0 0
    %147 = vmatpush1.bf16.msra.mxu0 0
    %148 = vmatprep.subr.bf16.mxu0 0
    %149 = vmatpush1.bf16.msra.mxu0 0
    %150 = vmatprep.subr.bf16.mxu0 0
    %151 = vmatpush1.bf16.msra.mxu0 0
    %152 = vmatprep.subr.bf16.mxu0 0
    %153 = vmatpush1.bf16.msra.mxu0 0
    %154 = vmatprep.subr.bf16.mxu0 0
    %155 = vmatpush1.bf16.msra.mxu0 0
    %156 = vmatprep.subr.bf16.mxu0 0
    %157 = vmatpush1.bf16.msra.mxu0 0
    %158 = vmatprep.mubr.bf16.mxu0 0
    %159 = vmatmul.mubr.bf16.gmra.mrb[0].mxu0 %v29
    %v160 = vpop.f32.mrb[0].mxu0
    %v161 = vadd.f32 0.0, %v160
    %v162 = vpop.f32.mrb[0].mxu0
    %v163 = vadd.f32 0.0, %v162
    %v164 = vpop.f32.mrb[0].mxu0
    %v165 = vpop.f32.mrb[0].mxu0
    %166 = vdwg.mxu0
    %v167 = vmul.f32 %v161, %v161
    %v168 = vmul.f32 %v163, %v163
    %v169 = vadd.f32 %v167, %v168
    %v170 = vlaneseq
    %v171 = vand.u32 %v170, 127
    %v172 = vld [vmem:[%s1] sm:$0xff]
    %173 = vset.pattern.permute.xlu0 0
    %174 = vperm.xlu0 %173, %v172
    %v175 = vpop.permute.xlu0 %174
    %vm176 = vcmp.eq.s32.totalorder %v171, %v175
    %v177 = vsel %vm176, %v169, 0.0
    %178 = vadd.xlane.f32.xlu0 %v177
    %v179 = vpop.xlane.xlu0 %178
    %vm180 = vcmp.ge.s32.totalorder %v171, 4
    %v181 = vsub.s32 %v172, 2
    %182 = vset.pattern.permute.xlu0 0
    %183 = vperm.xlu0 %182, %v181
    %v184 = vpop.permute.xlu0 %183
    %vm185 = vcmp.le.s32.totalorder %v171, %v184
    %vm186 = vmand %vm180, %vm185
    %v187 = vadd.s32 %v172, 2
    %188 = vset.pattern.permute.xlu0 0
    %189 = vperm.xlu0 %188, %v187
    %v190 = vpop.permute.xlu0 %189
    %vm191 = vcmp.ge.s32.totalorder %v171, %v190
    %vm192 = vcmp.le.s32.totalorder %v171, 26
    %vm193 = vmand %vm191, %vm192
    %vm194 = vmor %vm186, %vm193
    %v195 = vsel %vm194, %v169, 0.0
    %196 = vadd.xlane.f32.xlu0 %v195
    %v197 = vpop.xlane.xlu0 %196
    %v198 = vmul.f32 %v197, 0.05
    %v199 = vlog2.pop %v179
    %v200 = vmul.f32 %v199, 0.6931472
    %v201 = vlog2.pop %v198
    %v202 = vmul.f32 %v201, 0.6931472
    %v203 = vsub.f32 %v200, %v202
    %v204 = vmul.f32 %v203, -4.3429446
    %vm205 = vcmask 7168
    %206 = vst.msk [vmem:[%s3] sm:$0xff] %vm205, %v204
    // Predicated region
    $region18: #{tpu_custom_call.1} parent=1 // pred_check
      _
    $region19: #{tpu_custom_call.1} parent=1 // pred_check_branch
      %208 = sbr.rel (0) target = $region21
    $region20: #{tpu_custom_call.1} parent=1 // pred_region
      _
    $region21: #{tpu_custom_call.1} parent=1 // pred_fallthru
      _
    // Predicated region
    $region22: #{tpu_custom_call.1} parent=1 // pred_check
      _
    $region23: #{tpu_custom_call.1} parent=1 // pred_check_branch
      %210 = sbr.rel (0) target = $region25
    $region24: #{tpu_custom_call.1} parent=1 // pred_region
      _
    $region25: #{tpu_custom_call.1} parent=1 // pred_fallthru
      _
    %211 = vsyncpa [#allocation3], 1

</llo_original>
